<compile_context>
chip_gen: v7x
topology: tpu7x:2x2x1
jax: 0.10.0
libtpu: 0.0.40
codegen_flags: <defaults>
</compile_context>

<pallas_src>
import jax
import jax.numpy as jnp
from jax.experimental import pallas as pl
from jax.experimental.pallas import tpu as pltpu

_LANE = 128
_SUBLANE = 8


def _round_up(x, m):
    return ((x + m - 1) // m) * m


def _mlp_kernel(x_ref, w1_ref, w2_ref, w3_ref, b_ref, o_ref):
    """One batch tile of the fused 3-layer MLP. Weights are grid-invariant (VMEM-resident)."""
    hp = w1_ref.shape[1]          # padded hidden width (multiple of 128)
    op = w3_ref.shape[1]          # padded output width (multiple of 128)
    out_dim = o_ref.shape[1]      # true output width (narrow store)
    wdt = w1_ref.dtype

    def _lhs(a):
        # Match LHS dtype to the weight dtype so a bf16 weight pack takes the native
        # bf16 MXU path (a mixed f32 x bf16 dot silently promotes weights back to f32).
        return a if a.dtype == wdt else a.astype(wdt)

    b1 = b_ref[:, 0:hp]
    b2 = b_ref[:, hp:2 * hp]
    b3 = b_ref[:, 2 * hp:2 * hp + op]

    h1 = jnp.dot(_lhs(x_ref[...]), w1_ref[...], preferred_element_type=jnp.float32) + b1
    h1 = jnp.maximum(h1, 0.0)
    h2 = jnp.dot(_lhs(h1), w2_ref[...], preferred_element_type=jnp.float32) + b2
    h2 = jnp.maximum(h2, 0.0)
    out = jnp.dot(_lhs(h2), w3_ref[...], preferred_element_type=jnp.float32) + b3
    # Narrow (masked) store: drop the zero-padded output lanes before writeback.
    o_ref[...] = out[:, :out_dim].astype(o_ref.dtype)


def init_simple_net_params(key, input_dim, output_dim, hidden_dim):
    """PyTorch nn.Linear default init: U[-1/sqrt(fan_in), 1/sqrt(fan_in)], W stored as (in, out)."""
    def linear(k, fan_in, fan_out):
        kw, kb = jax.random.split(k)
        bound = 1.0 / jnp.sqrt(fan_in)
        w = jax.random.uniform(kw, (fan_in, fan_out), jnp.float32, -bound, bound)
        b = jax.random.uniform(kb, (fan_out,), jnp.float32, -bound, bound)
        return w, b

    k1, k2, k3 = jax.random.split(key, 3)
    w1, b1 = linear(k1, input_dim, hidden_dim)
    w2, b2 = linear(k2, hidden_dim, hidden_dim)
    w3, b3 = linear(k3, hidden_dim, output_dim)
    return {"w1": w1, "b1": b1, "w2": w2, "b2": b2, "w3": w3, "b3": b3}


def pack_simple_net_params(params, dtype=jnp.float32):
    """One-time pack/pad: hidden & output widths -> multiples of 128 (zero-padded, exact
    semantics preserved), biases concatenated into a single lane-aligned f32 row.

    dtype=jnp.bfloat16 halves weight DMA and enables the native bf16 MXU path (the kernel
    casts the matmul LHS to match); expect bf16-level numerics in that mode."""
    w1, b1 = params["w1"], params["b1"]
    w2, b2 = params["w2"], params["b2"]
    w3, b3 = params["w3"], params["b3"]
    in_dim, h = w1.shape
    out_dim = w3.shape[1]
    hp = _round_up(h, _LANE)
    op = _round_up(out_dim, _LANE)

    w1p = jnp.zeros((in_dim, hp), dtype).at[:, :h].set(w1.astype(dtype))
    w2p = jnp.zeros((hp, hp), dtype).at[:h, :h].set(w2.astype(dtype))
    w3p = jnp.zeros((hp, op), dtype).at[:h, :out_dim].set(w3.astype(dtype))

    b = jnp.zeros((1, 2 * hp + op), jnp.float32)
    b = b.at[:, 0:h].set(b1.reshape(1, h))
    b = b.at[:, hp:hp + h].set(b2.reshape(1, h))
    b = b.at[:, 2 * hp:2 * hp + out_dim].set(b3.reshape(1, out_dim))

    return {"w1": w1p, "w2": w2p, "w3": w3p, "b": b, "out_dim": out_dim}


def simple_net_forward(x, packed, *, block_batch=None):
    """Fused 3-layer MLP forward.

    Args:
      x: (batch, input_dim) float32.
      packed: output of pack_simple_net_params.
      block_batch: rows per grid step (auto if None): one tile for batches <= 1024,
                   1024-row pipelined tiles for larger batches.
    Returns:
      (batch, output_dim) float32.
    """
    batch, in_dim = x.shape
    w1, w2, w3, b = packed["w1"], packed["w2"], packed["w3"], packed["b"]
    out_dim = packed["out_dim"]
    hp = w1.shape[1]
    op = w3.shape[1]

    if block_batch is None:
        block_batch = batch if batch <= 1024 else 1024
    # Either one full-batch block (any size is legal when it equals the full dim) or a
    # sublane-aligned tile; Pallas masks the ragged last block — no jnp.pad of x needed.
    tm = batch if block_batch >= batch else _round_up(block_batch, _SUBLANE)
    grid = (pl.cdiv(batch, tm),)

    flops = 2 * batch * (in_dim * hp + hp * hp + hp * op)
    bytes_accessed = (x.nbytes + w1.nbytes + w2.nbytes + w3.nbytes + b.nbytes
                      + batch * out_dim * 4)

    out = pl.pallas_call(
        _mlp_kernel,
        out_shape=jax.ShapeDtypeStruct((batch, out_dim), jnp.float32),
        grid=grid,
        in_specs=[
            pl.BlockSpec((tm, in_dim), lambda i: (i, 0)),       # x: streamed per batch tile
            pl.BlockSpec((in_dim, hp), lambda i: (0, 0)),       # w1: resident across grid
            pl.BlockSpec((hp, hp), lambda i: (0, 0)),           # w2: resident
            pl.BlockSpec((hp, op), lambda i: (0, 0)),           # w3: resident
            pl.BlockSpec((1, 2 * hp + op), lambda i: (0, 0)),   # packed biases: resident
        ],
        out_specs=pl.BlockSpec((tm, out_dim), lambda i: (i, 0)),  # narrow (true) output width
        compiler_params=pltpu.CompilerParams(
            dimension_semantics=("parallel",)),                   # shard batch across v7x TCs
        cost_estimate=pl.CostEstimate(
            flops=flops, transcendentals=0, bytes_accessed=bytes_accessed),
    )(x, w1, w2, w3, b)

    return out


def _reference_forward(x, p):
    h1 = jnp.maximum(x @ p["w1"] + p["b1"], 0.0)
    h2 = jnp.maximum(h1 @ p["w2"] + p["b2"], 0.0)
    return h2 @ p["w3"] + p["b3"]


if __name__ == "__main__":
    # Small MADDPG-style actor/critic shapes.
    input_dim, hidden_dim, output_dim = 16, 32, 5

    key = jax.random.PRNGKey(0)
    kx1, kx2, kp = jax.random.split(key, 3)
    params = init_simple_net_params(kp, input_dim, output_dim, hidden_dim)
    packed = pack_simple_net_params(params)  # one-time pad/pack (not per forward call)

    # (a) Default path: batch <= 1024 -> single full-batch tile, grid=(1,).
    x1 = jax.random.normal(kx1, (64, input_dim), jnp.float32)
    out1 = jax.block_until_ready(simple_net_forward(x1, packed))
    assert out1.shape == (64, output_dim)
    assert jnp.allclose(out1, _reference_forward(x1, params), atol=1e-5, rtol=1e-5)

    # (b) Multi-tile grid with a ragged last block (exercises the cdiv-grid masking path;
    #     a correctness check only — not a perf-tuned tile size for such a small batch).
    x2 = jax.random.normal(kx2, (70, input_dim), jnp.float32)
    out2 = jax.block_until_ready(simple_net_forward(x2, packed, block_batch=48))
    assert out2.shape == (70, output_dim)
    assert jnp.allclose(out2, _reference_forward(x2, params), atol=1e-5, rtol=1e-5)

    print("KERNEL_OK")
</pallas_src>

<mosaic_0001>
module attributes {stable_mosaic.version = 11 : i64} {
  func.func @_mlp_kernel(%arg0: i32, %arg1: memref<64x16xf32, #tpu.memory_space<vmem>>, %arg2: memref<16x128xf32, #tpu.memory_space<vmem>>, %arg3: memref<128x128xf32, #tpu.memory_space<vmem>>, %arg4: memref<128x128xf32, #tpu.memory_space<vmem>>, %arg5: memref<1x384xf32, #tpu.memory_space<vmem>>, %arg6: memref<64x5xf32, #tpu.memory_space<vmem>>) attributes {dimension_semantics = [#tpu.dimension_semantics<parallel>], iteration_bounds = array<i64: 1>, scalar_prefetch = 0 : i64, scratch_operands = 0 : i64, tpu.core_type = #tpu.core_type<tc>, window_params = [{transform_indices = @transform_0, window_bounds = array<i64: 64, 16>}, {pipeline_mode = #tpu.pipeline_mode<synchronous>, transform_indices = @transform_1, window_bounds = array<i64: 16, 128>}, {pipeline_mode = #tpu.pipeline_mode<synchronous>, transform_indices = @transform_2, window_bounds = array<i64: 128, 128>}, {pipeline_mode = #tpu.pipeline_mode<synchronous>, transform_indices = @transform_3, window_bounds = array<i64: 128, 128>}, {pipeline_mode = #tpu.pipeline_mode<synchronous>, transform_indices = @transform_4, window_bounds = array<i64: 1, 384>}, {transform_indices = @transform_5, window_bounds = array<i64: 64, 5>}]} {
    %c0 = arith.constant 0 : index
    %c0_0 = arith.constant 0 : index
    %0 = vector.load %arg5[%c0, %c0_0] : memref<1x384xf32, #tpu.memory_space<vmem>>, vector<1x128xf32>
    %c0_1 = arith.constant 0 : index
    %c128 = arith.constant 128 : index
    %1 = vector.load %arg5[%c0_1, %c128] : memref<1x384xf32, #tpu.memory_space<vmem>>, vector<1x128xf32>
    %c0_2 = arith.constant 0 : index
    %c256 = arith.constant 256 : index
    %2 = vector.load %arg5[%c0_2, %c256] : memref<1x384xf32, #tpu.memory_space<vmem>>, vector<1x128xf32>
    %c0_3 = arith.constant 0 : index
    %c0_4 = arith.constant 0 : index
    %3 = vector.load %arg1[%c0_3, %c0_4] : memref<64x16xf32, #tpu.memory_space<vmem>>, vector<64x16xf32>
    %c0_5 = arith.constant 0 : index
    %c0_6 = arith.constant 0 : index
    %4 = vector.load %arg2[%c0_5, %c0_6] : memref<16x128xf32, #tpu.memory_space<vmem>>, vector<16x128xf32>
    %cst = arith.constant dense<0.000000e+00> : vector<64x128xf32>
    %5 = tpu.matmul %3, %4, %cst {dimension_numbers = #tpu.dot_dimension_numbers<[1], [0], [0], [1], [0, 0, 1, 1], [], []>} : vector<64x16xf32>, vector<16x128xf32>, vector<64x128xf32> -> vector<64x128xf32>
    %6 = vector.broadcast %0 : vector<1x128xf32> to vector<64x128xf32>
    %7 = arith.addf %5, %6 : vector<64x128xf32>
    %cst_7 = arith.constant 0.000000e+00 : f32
    %8 = vector.broadcast %cst_7 : f32 to vector<64x128xf32>
    %9 = arith.maximumf %7, %8 : vector<64x128xf32>
    %c0_8 = arith.constant 0 : index
    %c0_9 = arith.constant 0 : index
    %10 = vector.load %arg3[%c0_8, %c0_9] : memref<128x128xf32, #tpu.memory_space<vmem>>, vector<128x128xf32>
    %cst_10 = arith.constant dense<0.000000e+00> : vector<64x128xf32>
    %11 = tpu.matmul %9, %10, %cst_10 {dimension_numbers = #tpu.dot_dimension_numbers<[1], [0], [0], [1], [0, 0, 1, 1], [], []>} : vector<64x128xf32>, vector<128x128xf32>, vector<64x128xf32> -> vector<64x128xf32>
    %12 = vector.broadcast %1 : vector<1x128xf32> to vector<64x128xf32>
    %13 = arith.addf %11, %12 : vector<64x128xf32>
    %cst_11 = arith.constant 0.000000e+00 : f32
    %14 = vector.broadcast %cst_11 : f32 to vector<64x128xf32>
    %15 = arith.maximumf %13, %14 : vector<64x128xf32>
    %c0_12 = arith.constant 0 : index
    %c0_13 = arith.constant 0 : index
    %16 = vector.load %arg4[%c0_12, %c0_13] : memref<128x128xf32, #tpu.memory_space<vmem>>, vector<128x128xf32>
    %cst_14 = arith.constant dense<0.000000e+00> : vector<64x128xf32>
    %17 = tpu.matmul %15, %16, %cst_14 {dimension_numbers = #tpu.dot_dimension_numbers<[1], [0], [0], [1], [0, 0, 1, 1], [], []>} : vector<64x128xf32>, vector<128x128xf32>, vector<64x128xf32> -> vector<64x128xf32>
    %18 = vector.broadcast %2 : vector<1x128xf32> to vector<64x128xf32>
    %19 = arith.addf %17, %18 : vector<64x128xf32>
    %20 = vector.extract_strided_slice %19 {offsets = [0, 0], sizes = [64, 5], strides = [1, 1]} : vector<64x128xf32> to vector<64x5xf32>
    %c0_15 = arith.constant 0 : index
    %c0_16 = arith.constant 0 : index
    %21 = vector.load %arg6[%c0_15, %c0_16] : memref<64x5xf32, #tpu.memory_space<vmem>>, vector<64x5xf32>
    tpu.vector_store %arg6[%c0_15, %c0_16], %20 {strides = array<i32>} : memref<64x5xf32, #tpu.memory_space<vmem>>, vector<64x5xf32>,
    return
  }
  func.func @transform_0(%arg0: i32) -> (i32, i32) {
    %c0_i32 = arith.constant 0 : i32
    %c0_i32_0 = arith.constant 0 : i32
    return %arg0, %c0_i32 : i32, i32
  }
  func.func @transform_1(%arg0: i32) -> (i32, i32) {
    %c0_i32 = arith.constant 0 : i32
    %c0_i32_0 = arith.constant 0 : i32
    %c0_i32_1 = arith.constant 0 : i32
    return %c0_i32, %c0_i32_0 : i32, i32
  }
  func.func @transform_2(%arg0: i32) -> (i32, i32) {
    %c0_i32 = arith.constant 0 : i32
    %c0_i32_0 = arith.constant 0 : i32
    %c0_i32_1 = arith.constant 0 : i32
    return %c0_i32, %c0_i32_0 : i32, i32
  }
  func.func @transform_3(%arg0: i32) -> (i32, i32) {
    %c0_i32 = arith.constant 0 : i32
    %c0_i32_0 = arith.constant 0 : i32
    %c0_i32_1 = arith.constant 0 : i32
    return %c0_i32, %c0_i32_0 : i32, i32
  }
  func.func @transform_4(%arg0: i32) -> (i32, i32) {
    %c0_i32 = arith.constant 0 : i32
    %c0_i32_0 = arith.constant 0 : i32
    %c0_i32_1 = arith.constant 0 : i32
    return %c0_i32, %c0_i32_0 : i32, i32
  }
  func.func @transform_5(%arg0: i32) -> (i32, i32) {
    %c0_i32 = arith.constant 0 : i32
    %c0_i32_0 = arith.constant 0 : i32
    return %arg0, %c0_i32 : i32, i32
  }
}

</mosaic_0001>

<llo_original>
// kernel: tpu_custom_call.1
$region0: #{tpu_custom_call.1}
  #allocation0 [shape = 'u32[]', space=smem, size = 0x4, offset = 0x4, fixed_abs, tag = 'smem constant byte address 0x4 - core index']
  #allocation1 [shape = 'u32[144,128]{1,0:T(1,128)}', space=vmem, size = 0x12000, scoped, tag = 'internal scratch']
  %s0 = inlined_call_operand.vmem [shape: f32[64,16], index: 0, kind: input, shape index: {}]
  %s1 = inlined_call_operand.vmem [shape: f32[16,128], index: 1, kind: input, shape index: {}]
  %s2 = inlined_call_operand.hbm [shape: f32[128,128], index: 2, kind: input, shape index: {}]
  %s3 = inlined_call_operand.hbm [shape: f32[128,128], index: 3, kind: input, shape index: {}]
  %s4 = inlined_call_operand.vmem [shape: f32[1,384], index: 4, kind: input, shape index: {}]
  %s5 = inlined_call_operand.vmem [shape: f32[64,5], index: 5, kind: output, shape index: {}]
  %s6 = sld [smem:[#allocation0]]
  $region38: #{tpu_custom_call.1} parent=0
    _
  %s8 = ssub.s32 1, %s6
  %s9 = scalar_select 0, %s8, %s6
  $region1: #{tpu_custom_call.1} parent=0
    #allocation2 [shape = 'u8[65536]{0}', space=vmem, size = 0x10000, scoped, tag = 'input window, operand 2, single buffered']
    #allocation3 [shape = 's32[1]{0}', space=sflag, size = 0x4, scoped, tag = 'scoped memory for tpu_custom_call.1']
    #allocation4 [shape = 'u8[65536]{0}', space=vmem, size = 0x10000, scoped, tag = 'input window, operand 3, single buffered']
    #allocation5 [shape = 's32[1]{0}', space=sflag, size = 0x4, scoped, tag = 'scoped memory for tpu_custom_call.1']
    %10 = vsyncpa [#allocation3], 0
    %11 = vsyncpa [#allocation5], 0
    // Predicated region
    $region2: #{tpu_custom_call.1} parent=1 // pred_check
      _
    $region3: #{tpu_custom_call.1} parent=1 // pred_check_branch
      %13 = sbr.rel (0) target = $region5
    $region4: #{tpu_custom_call.1} parent=1 // pred_region
      _
    $region5: #{tpu_custom_call.1} parent=1 // pred_fallthru
      _
    // Predicated region
    $region6: #{tpu_custom_call.1} parent=1 // pred_check
      _
    $region7: #{tpu_custom_call.1} parent=1 // pred_check_branch
      %15 = sbr.rel (0) target = $region9
    $region8: #{tpu_custom_call.1} parent=1 // pred_region
      _
    $region9: #{tpu_custom_call.1} parent=1 // pred_fallthru
      _
    // Predicated region
    $region10: #{tpu_custom_call.1} parent=1 // pred_check
      _
    $region11: #{tpu_custom_call.1} parent=1 // pred_check_branch
      %17 = sbr.rel (0) target = $region13
    $region12: #{tpu_custom_call.1} parent=1 // pred_region
      %s19 = ssub.s32 2048, 2048
      %20 = vsyncadd [#allocation3], %s19
      %s21 = sshll.u32 [#allocation2], 4
      %s22 = int_to_ptr.vmem [resolvable:$true] %s21
      %27 = dma.hbm_to_vmem [thread:$0]  %s2, 2048, %s22, [#allocation3], 128, 128, 8
    $region13: #{tpu_custom_call.1} parent=1 // pred_fallthru
      _
    // Predicated region
    $region14: #{tpu_custom_call.1} parent=1 // pred_check
      _
    $region15: #{tpu_custom_call.1} parent=1 // pred_check_branch
      %29 = sbr.rel (0) target = $region17
    $region16: #{tpu_custom_call.1} parent=1 // pred_region
      %s31 = ssub.s32 2048, 2048
      %32 = vsyncadd [#allocation5], %s31
      %s33 = sshll.u32 [#allocation4], 4
      %s34 = int_to_ptr.vmem [resolvable:$true] %s33
      %39 = dma.hbm_to_vmem [thread:$0]  %s3, 2048, %s34, [#allocation5], 128, 128, 8
    $region17: #{tpu_custom_call.1} parent=1 // pred_fallthru
      _
    // Predicated region
    $region18: #{tpu_custom_call.1} parent=1 // pred_check
      _
    $region19: #{tpu_custom_call.1} parent=1 // pred_check_branch
      %41 = sbr.rel (0) target = $region21
    $region20: #{tpu_custom_call.1} parent=1 // pred_region
      _
    $region21: #{tpu_custom_call.1} parent=1 // pred_fallthru
      _
    // Predicated region
    $region22: #{tpu_custom_call.1} parent=1 // pred_check
      _
    $region23: #{tpu_custom_call.1} parent=1 // pred_check_branch
      %43 = sbr.rel (0) target = $region25
    $region24: #{tpu_custom_call.1} parent=1 // pred_region
      %44 = dma.done [#allocation3], 2048
    $region25: #{tpu_custom_call.1} parent=1 // pred_fallthru
      _
    // Predicated region
    $region26: #{tpu_custom_call.1} parent=1 // pred_check
      _
    $region27: #{tpu_custom_call.1} parent=1 // pred_check_branch
      %46 = sbr.rel (0) target = $region29
    $region28: #{tpu_custom_call.1} parent=1 // pred_region
      %47 = dma.done [#allocation5], 2048
    $region29: #{tpu_custom_call.1} parent=1 // pred_fallthru
      _
    %v48 = vld [vmem:[%s4] sm:$0x1]
    %v49 = vld [vmem:[%s4 + $0x1] sm:$0x1]
    %v50 = vld [vmem:[%s4 + $0x2] sm:$0x1]
    %v51 = vld [vmem:[%s0] sm:$0xff]
    %v52 = vld [vmem:[%s0 + $0x8] sm:$0xff]
    %v53 = vld [vmem:[%s0 + $0x10] sm:$0xff]
    %v54 = vld [vmem:[%s0 + $0x18] sm:$0xff]
    %v55 = vld [vmem:[%s0 + $0x20] sm:$0xff]
    %v56 = vld [vmem:[%s0 + $0x28] sm:$0xff]
    %v57 = vld [vmem:[%s0 + $0x30] sm:$0xff]
    %v58 = vld [vmem:[%s0 + $0x38] sm:$0xff]
    %v59 = vld [vmem:[%s1] sm:$0xff]
    %v60 = vld [vmem:[%s1 + $0x8] sm:$0xff]
    %v62 = vlaneseq
    %v63 = vshrl.u32 %v62, 7
    %v64 = vsub.s32 0, %v63
    %v65 = vrot.slane %v48, %v64
    %vm67 = vcmask 130048
    %v69 = vsel %vm67, %v51, 0
    %v72 = vsel %vm67, %v52, 0
    %v75 = vsel %vm67, %v53, 0
    %v78 = vsel %vm67, %v54, 0
    %v81 = vsel %vm67, %v55, 0
    %v84 = vsel %vm67, %v56, 0
    %v87 = vsel %vm67, %v57, 0
    %v90 = vsel %vm67, %v58, 0
    %92 = vmatprep.subr.mxu0 0.0
    %93 = vmatpush1.msra.mxu0 %v59
    %94 = vmatprep.subr.mxu0 0.0
    %95 = vmatpush1.msra.mxu0 %v60
    %96 = vmatprep.subr.mxu0 0.0
    %97 = vmatpush1.msra.mxu0 0.0
    %98 = vmatprep.subr.mxu0 0.0
    %99 = vmatpush1.msra.mxu0 0.0
    %100 = vmatprep.subr.mxu0 0.0
    %101 = vmatpush1.msra.mxu0 0.0
    %102 = vmatprep.subr.mxu0 0.0
    %103 = vmatpush1.msra.mxu0 0.0
    %104 = vmatprep.subr.mxu0 0.0
    %105 = vmatpush1.msra.mxu0 0.0
    %106 = vmatprep.subr.mxu0 0.0
    %107 = vmatpush1.msra.mxu0 0.0
    %108 = vmatprep.subr.mxu0 0.0
    %109 = vmatpush1.msra.mxu0 0.0
    %110 = vmatprep.subr.mxu0 0.0
    %111 = vmatpush1.msra.mxu0 0.0
    %112 = vmatprep.subr.mxu0 0.0
    %113 = vmatpush1.msra.mxu0 0.0
    %114 = vmatprep.subr.mxu0 0.0
    %115 = vmatpush1.msra.mxu0 0.0
    %116 = vmatprep.subr.mxu0 0.0
    %117 = vmatpush1.msra.mxu0 0.0
    %118 = vmatprep.subr.mxu0 0.0
    %119 = vmatpush1.msra.mxu0 0.0
    %120 = vmatprep.subr.mxu0 0.0
    %121 = vmatpush1.msra.mxu0 0.0
    %122 = vmatprep.subr.mxu0 0.0
    %123 = vmatpush1.msra.mxu0 0.0
    %124 = vmatprep.subr.mxu0 0.0
    %125 = vmatpush1.msra.mxu0 0.0
    %126 = vmatprep.subr.mxu0 0.0
    %127 = vmatpush1.msra.mxu0 0.0
    %128 = vmatprep.subr.mxu0 0.0
    %129 = vmatpush1.msra.mxu0 0.0
    %130 = vmatprep.subr.mxu0 0.0
    %131 = vmatpush1.msra.mxu0 0.0
    %132 = vmatprep.subr.mxu0 0.0
    %133 = vmatpush1.msra.mxu0 0.0
    %134 = vmatprep.subr.mxu0 0.0
    %135 = vmatpush1.msra.mxu0 0.0
    %136 = vmatprep.subr.mxu0 0.0
    %137 = vmatpush1.msra.mxu0 0.0
    %138 = vmatprep.subr.mxu0 0.0
    %139 = vmatpush1.msra.mxu0 0.0
    %140 = vmatprep.subr.mxu0 0.0
    %141 = vmatpush1.msra.mxu0 0.0
    %142 = vmatprep.subr.mxu0 0.0
    %143 = vmatpush1.msra.mxu0 0.0
    %144 = vmatprep.subr.mxu0 0.0
    %145 = vmatpush1.msra.mxu0 0.0
    %146 = vmatprep.subr.mxu0 0.0
    %147 = vmatpush1.msra.mxu0 0.0
    %148 = vmatprep.subr.mxu0 0.0
    %149 = vmatpush1.msra.mxu0 0.0
    %150 = vmatprep.subr.mxu0 0.0
    %151 = vmatpush1.msra.mxu0 0.0
    %152 = vmatprep.subr.mxu0 0.0
    %153 = vmatpush1.msra.mxu0 0.0
    %154 = vmatprep.subr.mxu0 0.0
    %155 = vmatpush1.msra.mxu0 0.0
    %156 = vmatprep.mubr.f32.mxu0 0.0
    %157 = vmatmul.mubr.f32.gmra.mrb[0].mxu0 %v69
    %v158 = vpop.f32.mrb[0].mxu0
    %v159 = vadd.f32 %v65, %v158
    %v160 = vpop.f32.mrb[0].mxu0
    %161 = vmatprep.mubr.f32.mxu0 0.0
    %162 = vmatmul.mubr.f32.gmra.mrb[0].mxu0 %v72
    %v163 = vpop.f32.mrb[0].mxu0
    %v164 = vadd.f32 %v65, %v163
    %v165 = vpop.f32.mrb[0].mxu0
    %166 = vmatprep.mubr.f32.mxu0 0.0
    %167 = vmatmul.mubr.f32.gmra.mrb[0].mxu0 %v75
    %v168 = vpop.f32.mrb[0].mxu0
    %v169 = vadd.f32 %v65, %v168
    %v170 = vpop.f32.mrb[0].mxu0
    %171 = vmatprep.mubr.f32.mxu0 0.0
    %172 = vmatmul.mubr.f32.gmra.mrb[0].mxu0 %v78
    %v173 = vpop.f32.mrb[0].mxu0
    %v174 = vadd.f32 %v65, %v173
    %v175 = vpop.f32.mrb[0].mxu0
    %176 = vmatprep.mubr.f32.mxu0 0.0
    %177 = vmatmul.mubr.f32.gmra.mrb[0].mxu0 %v81
    %v178 = vpop.f32.mrb[0].mxu0
    %v179 = vadd.f32 %v65, %v178
    %v180 = vpop.f32.mrb[0].mxu0
    %181 = vmatprep.mubr.f32.mxu0 0.0
    %182 = vmatmul.mubr.f32.gmra.mrb[0].mxu0 %v84
    %v183 = vpop.f32.mrb[0].mxu0
    %v184 = vadd.f32 %v65, %v183
    %v185 = vpop.f32.mrb[0].mxu0
    %186 = vmatprep.mubr.f32.mxu0 0.0
    %187 = vmatmul.mubr.f32.gmra.mrb[0].mxu0 %v87
    %v188 = vpop.f32.mrb[0].mxu0
    %v189 = vadd.f32 %v65, %v188
    %v190 = vpop.f32.mrb[0].mxu0
    %191 = vmatprep.mubr.f32.mxu0 0.0
    %192 = vmatmul.mubr.f32.gmra.mrb[0].mxu0 %v90
    %v193 = vpop.f32.mrb[0].mxu0
    %v194 = vadd.f32 %v65, %v193
    %v195 = vpop.f32.mrb[0].mxu0
    %196 = vdwg.mxu0
    %v197 = vmax.f32 %v159, 0.0
    %v198 = vmax.f32 %v164, 0.0
    %v199 = vmax.f32 %v169, 0.0
    %v200 = vmax.f32 %v174, 0.0
    %v201 = vmax.f32 %v179, 0.0
    %v202 = vmax.f32 %v184, 0.0
    %v203 = vmax.f32 %v189, 0.0
    %v204 = vmax.f32 %v194, 0.0
    %v205 = vld [vmem:[#allocation2] sm:$0xff]
    %v206 = vld [vmem:[#allocation2 + $0x8] sm:$0xff]
    %v207 = vld [vmem:[#allocation2 + $0x10] sm:$0xff]
    %v208 = vld [vmem:[#allocation2 + $0x18] sm:$0xff]
    %v209 = vld [vmem:[#allocation2 + $0x20] sm:$0xff]
    %v210 = vld [vmem:[#allocation2 + $0x28] sm:$0xff]
    %v211 = vld [vmem:[#allocation2 + $0x30] sm:$0xff]
    %v212 = vld [vmem:[#allocation2 + $0x38] sm:$0xff]
    %v213 = vld [vmem:[#allocation2 + $0x40] sm:$0xff]
    %v214 = vld [vmem:[#allocation2 + $0x48] sm:$0xff]
    %v215 = vld [vmem:[#allocation2 + $0x50] sm:$0xff]
    %v216 = vld [vmem:[#allocation2 + $0x58] sm:$0xff]
    %v217 = vld [vmem:[#allocation2 + $0x60] sm:$0xff]
    %v218 = vld [vmem:[#allocation2 + $0x68] sm:$0xff]
    %v219 = vld [vmem:[#allocation2 + $0x70] sm:$0xff]
    %v220 = vld [vmem:[#allocation2 + $0x78] sm:$0xff]
    %v222 = vlaneseq
    %v223 = vshrl.u32 %v222, 7
    %v224 = vsub.s32 0, %v223
    %v225 = vrot.slane %v49, %v224
    %227 = vmatprep.subr.mxu0 0.0
    %228 = vmatpush1.msra.mxu0 %v205
    %229 = vmatprep.subr.mxu0 0.0
    %230 = vmatpush1.msra.mxu0 %v206
    %231 = vmatprep.subr.mxu0 0.0
    %232 = vmatpush1.msra.mxu0 %v207
    %233 = vmatprep.subr.mxu0 0.0
    %234 = vmatpush1.msra.mxu0 %v208
    %235 = vmatprep.subr.mxu0 0.0
    %236 = vmatpush1.msra.mxu0 %v209
    %237 = vmatprep.subr.mxu0 0.0
    %238 = vmatpush1.msra.mxu0 %v210
    %239 = vmatprep.subr.mxu0 0.0
    %240 = vmatpush1.msra.mxu0 %v211
    %241 = vmatprep.subr.mxu0 0.0
    %242 = vmatpush1.msra.mxu0 %v212
    %243 = vmatprep.subr.mxu0 0.0
    %244 = vmatpush1.msra.mxu0 %v213
    %245 = vmatprep.subr.mxu0 0.0
    %246 = vmatpush1.msra.mxu0 %v214
    %247 = vmatprep.subr.mxu0 0.0
    %248 = vmatpush1.msra.mxu0 %v215
    %249 = vmatprep.subr.mxu0 0.0
    %250 = vmatpush1.msra.mxu0 %v216
    %251 = vmatprep.subr.mxu0 0.0
    %252 = vmatpush1.msra.mxu0 %v217
    %253 = vmatprep.subr.mxu0 0.0
    %254 = vmatpush1.msra.mxu0 %v218
    %255 = vmatprep.subr.mxu0 0.0
    %256 = vmatpush1.msra.mxu0 %v219
    %257 = vmatprep.subr.mxu0 0.0
    %258 = vmatpush1.msra.mxu0 %v220
    %259 = vmatprep.subr.mxu0 0.0
    %260 = vmatpush1.msra.mxu0 0.0
    %261 = vmatprep.subr.mxu0 0.0
    %262 = vmatpush1.msra.mxu0 0.0
    %263 = vmatprep.subr.mxu0 0.0
    %264 = vmatpush1.msra.mxu0 0.0
    %265 = vmatprep.subr.mxu0 0.0
    %266 = vmatpush1.msra.mxu0 0.0
    %267 = vmatprep.subr.mxu0 0.0
    %268 = vmatpush1.msra.mxu0 0.0
    %269 = vmatprep.subr.mxu0 0.0
    %270 = vmatpush1.msra.mxu0 0.0
    %271 = vmatprep.subr.mxu0 0.0
    %272 = vmatpush1.msra.mxu0 0.0
    %273 = vmatprep.subr.mxu0 0.0
    %274 = vmatpush1.msra.mxu0 0.0
    %275 = vmatprep.subr.mxu0 0.0
    %276 = vmatpush1.msra.mxu0 0.0
    %277 = vmatprep.subr.mxu0 0.0
    %278 = vmatpush1.msra.mxu0 0.0
    %279 = vmatprep.subr.mxu0 0.0
    %280 = vmatpush1.msra.mxu0 0.0
    %281 = vmatprep.subr.mxu0 0.0
    %282 = vmatpush1.msra.mxu0 0.0
    %283 = vmatprep.subr.mxu0 0.0
    %284 = vmatpush1.msra.mxu0 0.0
    %285 = vmatprep.subr.mxu0 0.0
    %286 = vmatpush1.msra.mxu0 0.0
    %287 = vmatprep.subr.mxu0 0.0
    %288 = vmatpush1.msra.mxu0 0.0
    %289 = vmatprep.subr.mxu0 0.0
    %290 = vmatpush1.msra.mxu0 0.0
    %291 = vmatprep.mubr.f32.mxu0 0.0
    %292 = vmatmul.mubr.f32.gmra.mrb[0].mxu0 %v197
    %v293 = vpop.f32.mrb[0].mxu0
    %v294 = vadd.f32 %v225, %v293
    %v295 = vpop.f32.mrb[0].mxu0
    %296 = vmatprep.mubr.f32.mxu0 0.0
    %297 = vmatmul.mubr.f32.gmra.mrb[0].mxu0 %v198
    %v298 = vpop.f32.mrb[0].mxu0
    %v299 = vadd.f32 %v225, %v298
    %v300 = vpop.f32.mrb[0].mxu0
    %301 = vmatprep.mubr.f32.mxu0 0.0
    %302 = vmatmul.mubr.f32.gmra.mrb[0].mxu0 %v199
    %v303 = vpop.f32.mrb[0].mxu0
    %v304 = vadd.f32 %v225, %v303
    %v305 = vpop.f32.mrb[0].mxu0
    %306 = vmatprep.mubr.f32.mxu0 0.0
    %307 = vmatmul.mubr.f32.gmra.mrb[0].mxu0 %v200
    %v308 = vpop.f32.mrb[0].mxu0
    %v309 = vadd.f32 %v225, %v308
    %v310 = vpop.f32.mrb[0].mxu0
    %311 = vmatprep.mubr.f32.mxu0 0.0
    %312 = vmatmul.mubr.f32.gmra.mrb[0].mxu0 %v201
    %v313 = vpop.f32.mrb[0].mxu0
    %v314 = vadd.f32 %v225, %v313
    %v315 = vpop.f32.mrb[0].mxu0
    %316 = vmatprep.mubr.f32.mxu0 0.0
    %317 = vmatmul.mubr.f32.gmra.mrb[0].mxu0 %v202
    %v318 = vpop.f32.mrb[0].mxu0
    %v319 = vadd.f32 %v225, %v318
    %v320 = vpop.f32.mrb[0].mxu0
    %321 = vmatprep.mubr.f32.mxu0 0.0
    %322 = vmatmul.mubr.f32.gmra.mrb[0].mxu0 %v203
    %v323 = vpop.f32.mrb[0].mxu0
    %v324 = vadd.f32 %v225, %v323
    %v325 = vpop.f32.mrb[0].mxu0
    %326 = vmatprep.mubr.f32.mxu0 0.0
    %327 = vmatmul.mubr.f32.gmra.mrb[0].mxu0 %v204
    %v328 = vpop.f32.mrb[0].mxu0
    %v329 = vadd.f32 %v225, %v328
    %v330 = vpop.f32.mrb[0].mxu0
    %331 = vdwg.mxu0
    %v332 = vmax.f32 %v294, 0.0
    %v333 = vmax.f32 %v299, 0.0
    %v334 = vmax.f32 %v304, 0.0
    %v335 = vmax.f32 %v309, 0.0
    %v336 = vmax.f32 %v314, 0.0
    %v337 = vmax.f32 %v319, 0.0
    %v338 = vmax.f32 %v324, 0.0
    %v339 = vmax.f32 %v329, 0.0
    %v340 = vld [vmem:[#allocation4] sm:$0xff]
    %v341 = vld [vmem:[#allocation4 + $0x8] sm:$0xff]
    %v342 = vld [vmem:[#allocation4 + $0x10] sm:$0xff]
    %v343 = vld [vmem:[#allocation4 + $0x18] sm:$0xff]
    %v344 = vld [vmem:[#allocation4 + $0x20] sm:$0xff]
    %v345 = vld [vmem:[#allocation4 + $0x28] sm:$0xff]
    %v346 = vld [vmem:[#allocation4 + $0x30] sm:$0xff]
    %v347 = vld [vmem:[#allocation4 + $0x38] sm:$0xff]
    %v348 = vld [vmem:[#allocation4 + $0x40] sm:$0xff]
    %v349 = vld [vmem:[#allocation4 + $0x48] sm:$0xff]
    %v350 = vld [vmem:[#allocation4 + $0x50] sm:$0xff]
    %v351 = vld [vmem:[#allocation4 + $0x58] sm:$0xff]
    %v352 = vld [vmem:[#allocation4 + $0x60] sm:$0xff]
    %v353 = vld [vmem:[#allocation4 + $0x68] sm:$0xff]
    %v354 = vld [vmem:[#allocation4 + $0x70] sm:$0xff]
    %v355 = vld [vmem:[#allocation4 + $0x78] sm:$0xff]
    %v357 = vlaneseq
    %v358 = vshrl.u32 %v357, 7
    %v359 = vsub.s32 0, %v358
    %v360 = vrot.slane %v50, %v359
    %362 = vmatprep.subr.mxu0 0.0
    %363 = vmatpush1.msra.mxu0 %v340
    %364 = vmatprep.subr.mxu0 0.0
    %365 = vmatpush1.msra.mxu0 %v341
    %366 = vmatprep.subr.mxu0 0.0
    %367 = vmatpush1.msra.mxu0 %v342
    %368 = vmatprep.subr.mxu0 0.0
    %369 = vmatpush1.msra.mxu0 %v343
    %370 = vmatprep.subr.mxu0 0.0
    %371 = vmatpush1.msra.mxu0 %v344
    %372 = vmatprep.subr.mxu0 0.0
    %373 = vmatpush1.msra.mxu0 %v345
    %374 = vmatprep.subr.mxu0 0.0
    %375 = vmatpush1.msra.mxu0 %v346
    %376 = vmatprep.subr.mxu0 0.0
    %377 = vmatpush1.msra.mxu0 %v347
    %378 = vmatprep.subr.mxu0 0.0
    %379 = vmatpush1.msra.mxu0 %v348
    %380 = vmatprep.subr.mxu0 0.0
    %381 = vmatpush1.msra.mxu0 %v349
    %382 = vmatprep.subr.mxu0 0.0
    %383 = vmatpush1.msra.mxu0 %v350
    %384 = vmatprep.subr.mxu0 0.0
    %385 = vmatpush1.msra.mxu0 %v351
    %386 = vmatprep.subr.mxu0 0.0
    %387 = vmatpush1.msra.mxu0 %v352
    %388 = vmatprep.subr.mxu0 0.0
    %389 = vmatpush1.msra.mxu0 %v353
    %390 = vmatprep.subr.mxu0 0.0
    %391 = vmatpush1.msra.mxu0 %v354
    %392 = vmatprep.subr.mxu0 0.0
    %393 = vmatpush1.msra.mxu0 %v355
    %394 = vmatprep.subr.mxu0 0.0
    %395 = vmatpush1.msra.mxu0 0.0
    %396 = vmatprep.subr.mxu0 0.0
    %397 = vmatpush1.msra.mxu0 0.0
    %398 = vmatprep.subr.mxu0 0.0
    %399 = vmatpush1.msra.mxu0 0.0
    %400 = vmatprep.subr.mxu0 0.0
    %401 = vmatpush1.msra.mxu0 0.0
    %402 = vmatprep.subr.mxu0 0.0
    %403 = vmatpush1.msra.mxu0 0.0
    %404 = vmatprep.subr.mxu0 0.0
    %405 = vmatpush1.msra.mxu0 0.0
    %406 = vmatprep.subr.mxu0 0.0
    %407 = vmatpush1.msra.mxu0 0.0
    %408 = vmatprep.subr.mxu0 0.0
    %409 = vmatpush1.msra.mxu0 0.0
    %410 = vmatprep.subr.mxu0 0.0
    %411 = vmatpush1.msra.mxu0 0.0
    %412 = vmatprep.subr.mxu0 0.0
    %413 = vmatpush1.msra.mxu0 0.0
    %414 = vmatprep.subr.mxu0 0.0
    %415 = vmatpush1.msra.mxu0 0.0
    %416 = vmatprep.subr.mxu0 0.0
    %417 = vmatpush1.msra.mxu0 0.0
    %418 = vmatprep.subr.mxu0 0.0
    %419 = vmatpush1.msra.mxu0 0.0
    %420 = vmatprep.subr.mxu0 0.0
    %421 = vmatpush1.msra.mxu0 0.0
    %422 = vmatprep.subr.mxu0 0.0
    %423 = vmatpush1.msra.mxu0 0.0
    %424 = vmatprep.subr.mxu0 0.0
    %425 = vmatpush1.msra.mxu0 0.0
    %426 = vmatprep.mubr.f32.mxu0 0.0
    %427 = vmatmul.mubr.f32.gmra.mrb[0].mxu0 %v332
    %v428 = vpop.f32.mrb[0].mxu0
    %v429 = vadd.f32 %v360, %v428
    %v430 = vpop.f32.mrb[0].mxu0
    %431 = vmatprep.mubr.f32.mxu0 0.0
    %432 = vmatmul.mubr.f32.gmra.mrb[0].mxu0 %v333
    %v433 = vpop.f32.mrb[0].mxu0
    %v434 = vadd.f32 %v360, %v433
    %v435 = vpop.f32.mrb[0].mxu0
    %436 = vmatprep.mubr.f32.mxu0 0.0
    %437 = vmatmul.mubr.f32.gmra.mrb[0].mxu0 %v334
    %v438 = vpop.f32.mrb[0].mxu0
    %v439 = vadd.f32 %v360, %v438
    %v440 = vpop.f32.mrb[0].mxu0
    %441 = vmatprep.mubr.f32.mxu0 0.0
    %442 = vmatmul.mubr.f32.gmra.mrb[0].mxu0 %v335
    %v443 = vpop.f32.mrb[0].mxu0
    %v444 = vadd.f32 %v360, %v443
    %v445 = vpop.f32.mrb[0].mxu0
    %446 = vmatprep.mubr.f32.mxu0 0.0
    %447 = vmatmul.mubr.f32.gmra.mrb[0].mxu0 %v336
    %v448 = vpop.f32.mrb[0].mxu0
    %v449 = vadd.f32 %v360, %v448
    %v450 = vpop.f32.mrb[0].mxu0
    %451 = vmatprep.mubr.f32.mxu0 0.0
    %452 = vmatmul.mubr.f32.gmra.mrb[0].mxu0 %v337
    %v453 = vpop.f32.mrb[0].mxu0
    %v454 = vadd.f32 %v360, %v453
    %v455 = vpop.f32.mrb[0].mxu0
    %456 = vmatprep.mubr.f32.mxu0 0.0
    %457 = vmatmul.mubr.f32.gmra.mrb[0].mxu0 %v338
    %v458 = vpop.f32.mrb[0].mxu0
    %v459 = vadd.f32 %v360, %v458
    %v460 = vpop.f32.mrb[0].mxu0
    %461 = vmatprep.mubr.f32.mxu0 0.0
    %462 = vmatmul.mubr.f32.gmra.mrb[0].mxu0 %v339
    %v463 = vpop.f32.mrb[0].mxu0
    %v464 = vadd.f32 %v360, %v463
    %v465 = vpop.f32.mrb[0].mxu0
    %466 = vdwg.mxu0
    %vm467 = vcmask 39936
    %468 = vst.msk [vmem:[%s5] sm:$0xff] %vm467, %v429
    %469 = vst.msk [vmem:[%s5 + $0x8] sm:$0xff] %vm467, %v434
    %470 = vst.msk [vmem:[%s5 + $0x10] sm:$0xff] %vm467, %v439
    %471 = vst.msk [vmem:[%s5 + $0x18] sm:$0xff] %vm467, %v444
    %472 = vst.msk [vmem:[%s5 + $0x20] sm:$0xff] %vm467, %v449
    %473 = vst.msk [vmem:[%s5 + $0x28] sm:$0xff] %vm467, %v454
    %474 = vst.msk [vmem:[%s5 + $0x30] sm:$0xff] %vm467, %v459
    %475 = vst.msk [vmem:[%s5 + $0x38] sm:$0xff] %vm467, %v464
    // Predicated region
    $region30: #{tpu_custom_call.1} parent=1 // pred_check
      _
    $region31: #{tpu_custom_call.1} parent=1 // pred_check_branch
      %477 = sbr.rel (0) target = $region33
    $region32: #{tpu_custom_call.1} parent=1 // pred_region
      _
    $region33: #{tpu_custom_call.1} parent=1 // pred_fallthru
      _
    // Predicated region
    $region34: #{tpu_custom_call.1} parent=1 // pred_check
      _
    $region35: #{tpu_custom_call.1} parent=1 // pred_check_branch
      %479 = sbr.rel (0) target = $region37
    $region36: #{tpu_custom_call.1} parent=1 // pred_region
      _
    $region37: #{tpu_custom_call.1} parent=1 // pred_fallthru
      _
    %480 = vsyncpa [#allocation3], 1
    %481 = vsyncpa [#allocation5], 1

</llo_original>
